<compile_context>
chip_gen: v7x
topology: tpu7x:2x2x1
jax: 0.10.0
libtpu: 0.0.40
codegen_flags: <defaults>
</compile_context>

<pallas_src>
import jax
import jax.numpy as jnp
import numpy as np
from jax.experimental import pallas as pl
from jax.experimental.pallas import tpu as pltpu


def _round_up(x, n):
    return -(-x // n) * n


def _action_embedding_kernel(idx_ref, rep_ref, thi_ref, tlo_ref, o_ref):
    # idx_ref: [TM, P]       int32    packed action indices (P tokens per row)
    # rep_ref: [P, P*A]      float32  lane-replication matrix (block rows of ones)
    # thi_ref: [P*A, P*Dp]   bfloat16 block-diagonal tanh table, high bf16 part
    # tlo_ref: [P*A, P*Dp]   bfloat16 block-diagonal tanh table, low  bf16 part
    # o_ref:   [TM, P*Dp]    float32
    tm, p = idx_ref.shape
    pa = thi_ref.shape[0]
    a = pa // p

    idx = idx_ref[...]
    # Per-token class code in the packed one-hot lane space: code = j*A + idx for
    # token slot j.  Out-of-range / negative indices map to -1 -> all-zero one-hot
    # -> zero embedding row (PyTorch's F.one_hot would raise instead).
    # TODO(synk): surface out-of-range action indices instead of zeroing them.
    off = jax.lax.broadcasted_iota(jnp.int32, (tm, p), 1) * a
    valid = jnp.logical_and(idx >= 0, idx < a)
    codes = jnp.where(valid, idx + off, -1).astype(jnp.float32)            # [TM, P]

    # Replicate each token's code across its A-wide lane block on the MXU
    # (each column of rep has exactly one 1.0 -> result is the exact integer code).
    code_rep = jnp.dot(codes, rep_ref[...],
                       preferred_element_type=jnp.float32)                 # [TM, PA]
    lane = jax.lax.broadcasted_iota(jnp.int32, (tm, pa), 1).astype(jnp.float32)
    # Rounding-tolerant equality keeps the one-hot correct even if the small f32
    # replication matmul is computed via bf16 passes.
    oh = jnp.where(jnp.abs(code_rep - lane) < 0.5, 1.0, 0.0).astype(jnp.bfloat16)

    # Row gather == packed one-hot @ block-diagonal table.  Exactly one non-zero
    # contribution per output element, so accumulating (hi + lo) in f32
    # reconstructs the f32 table value to < 4e-6 while running at bf16 MXU rate.
    acc = jnp.dot(oh, thi_ref[...], preferred_element_type=jnp.float32)
    acc = acc + jnp.dot(oh, tlo_ref[...], preferred_element_type=jnp.float32)
    o_ref[...] = acc


def make_action_embedding(weight, bias, *, tile_tokens=32768):
    """weight: [d_model, action_dim] (PyTorch nn.Linear layout); bias: [d_model].
    Returns a jitted forward: int [B, S] -> float32 [B, S, d_model]."""
    d_model, action_dim = weight.shape

    # tanh(one_hot(x) @ W^T + b) == tanh(W^T + b)[x]  ->  precompute the table once.
    table = jnp.tanh(weight.T.astype(jnp.float32)
                     + bias.astype(jnp.float32)[None, :])                  # [A, D]

    # Lane packing: P tokens per output row so the row width P*Dp is a multiple of
    # 128 lanes, and P*A one-hot lanes share (at most) one vreg to amortize VPU work.
    if d_model <= 128 and 128 % d_model == 0:
        d_pad, base = d_model, 128 // d_model
    else:
        d_pad, base = _round_up(d_model, 128), 1
    k = max(1, 128 // (action_dim * base))        # extra packing per one-hot vreg
    k = min(k, max(1, 2048 // (base * d_pad)))    # keep the packed row width modest
    pack = base * k
    cols = pack * d_pad
    pa = pack * action_dim

    if d_pad != d_model:
        table = jnp.pad(table, ((0, 0), (0, d_pad - d_model)))
    eye_p = jnp.eye(pack, dtype=jnp.float32)
    blockdiag = jnp.kron(eye_p, table)                                      # [PA, P*Dp]
    tab_hi = blockdiag.astype(jnp.bfloat16)
    tab_lo = (blockdiag - tab_hi.astype(jnp.float32)).astype(jnp.bfloat16)
    rep = jnp.kron(eye_p, jnp.ones((1, action_dim), jnp.float32))           # [P, PA]

    def forward(x):
        B, S = x.shape
        n = B * S
        n_pad = _round_up(n, pack)                 # pad tokens -> no masked-store path
        m = n_pad // pack

        idx = x.reshape(-1).astype(jnp.int32)
        if n_pad != n:
            idx = jnp.pad(idx, (0, n_pad - n))
        idx = idx.reshape(m, pack)

        # ~tile_tokens tokens per grid step, capped at an 8 MiB output block so the
        # double-buffered working set fits v7x's 64 MiB VMEM (ample on v5e/v6e).
        tokens = max(pack, min(tile_tokens, (8 * 1024 * 1024) // (4 * d_pad)))
        if m <= 8:
            tile_m = m
        else:
            tile_m = max(8, min(tokens // pack, m))
            # keep >= 2 grid steps so both v7x TensorCores get work
            tile_m = min(tile_m, _round_up(-(-m // 2), 8))
            if tile_m % 8 != 0:
                tile_m = max(8, (tile_m // 8) * 8)
        grid = (pl.cdiv(m, tile_m),)

        out = pl.pallas_call(
            _action_embedding_kernel,
            out_shape=jax.ShapeDtypeStruct((m, cols), jnp.float32),
            grid_spec=pltpu.PrefetchScalarGridSpec(
                num_scalar_prefetch=0,
                grid=grid,
                in_specs=[
                    pl.BlockSpec((tile_m, pack), lambda i: (i, 0)),   # per-tile indices
                    pl.BlockSpec((pack, pa), lambda i: (0, 0)),       # resident rep matrix
                    pl.BlockSpec((pa, cols), lambda i: (0, 0)),       # resident hi table
                    pl.BlockSpec((pa, cols), lambda i: (0, 0)),       # resident lo table
                ],
                out_specs=pl.BlockSpec((tile_m, cols), lambda i: (i, 0)),
            ),
            compiler_params=pltpu.CompilerParams(
                dimension_semantics=("parallel",),     # independent tiles -> megacore
                vmem_limit_bytes=48 * 1024 * 1024,
            ),
        )(idx, rep, tab_hi, tab_lo)

        # Packed [m, P*Dp] row-major == [n_pad, Dp] row-major; drop padding.
        out = out.reshape(n_pad, d_pad)[:n, :d_model]
        return out.reshape(B, S, d_model)

    return jax.jit(forward)


if __name__ == "__main__":
    # Small, deterministic setup consistent with the module's forward.
    B, S = 2, 8
    d_model, action_dim = 32, 6

    key = jax.random.PRNGKey(0)
    k_x, k_w, k_b, k_x2 = jax.random.split(key, 4)

    # Integer action indices in [0, action_dim).
    x = jax.random.randint(k_x, (B, S), 0, action_dim, dtype=jnp.int32)

    # Deterministic PyTorch-Linear-style init: U(-1/sqrt(in), 1/sqrt(in)).
    bound = 1.0 / np.sqrt(action_dim)
    weight = jax.random.uniform(k_w, (d_model, action_dim), jnp.float32,
                                minval=-bound, maxval=bound)
    bias = jax.random.uniform(k_b, (d_model,), jnp.float32,
                              minval=-bound, maxval=bound)

    fwd = make_action_embedding(weight, bias)

    def ref_fn(xi):
        oh = jax.nn.one_hot(xi, action_dim, dtype=jnp.float32)
        y = jnp.einsum("bsa,da->bsd", oh, weight,
                       precision=jax.lax.Precision.HIGHEST)
        return jnp.tanh(y + bias)

    out = jax.block_until_ready(fwd(x))
    assert out.shape == (B, S, d_model) and out.dtype == jnp.float32
    np.testing.assert_allclose(np.asarray(out), np.asarray(ref_fn(x)),
                               rtol=1e-5, atol=1e-5)

    # Longer sequence: exercises token padding (N=1038 is not a multiple of the
    # packing factor) and a multi-step, pipelined grid with a partial last block.
    B2, S2 = 2, 519
    x2 = jax.random.randint(k_x2, (B2, S2), 0, action_dim, dtype=jnp.int32)
    out2 = jax.block_until_ready(fwd(x2))
    assert out2.shape == (B2, S2, d_model)
    np.testing.assert_allclose(np.asarray(out2), np.asarray(ref_fn(x2)),
                               rtol=1e-5, atol=1e-5)

    print("KERNEL_OK")
</pallas_src>

<mosaic_0001>
module attributes {stable_mosaic.version = 11 : i64} {
  func.func @_action_embedding_kernel(%arg0: i32, %arg1: memref<1x20xi32, #tpu.memory_space<vmem>>, %arg2: memref<20x120xf32, #tpu.memory_space<vmem>>, %arg3: memref<120x640xbf16, #tpu.memory_space<vmem>>, %arg4: memref<120x640xbf16, #tpu.memory_space<vmem>>, %arg5: memref<1x640xf32, #tpu.memory_space<vmem>>) attributes {dimension_semantics = [#tpu.dimension_semantics<parallel>], iteration_bounds = array<i64: 1>, scalar_prefetch = 0 : i64, scratch_operands = 0 : i64, tpu.core_type = #tpu.core_type<tc>, window_params = [{transform_indices = @transform_0, window_bounds = array<i64: 1, 20>}, {pipeline_mode = #tpu.pipeline_mode<synchronous>, transform_indices = @transform_1, window_bounds = array<i64: 20, 120>}, {pipeline_mode = #tpu.pipeline_mode<synchronous>, transform_indices = @transform_2, window_bounds = array<i64: 120, 640>}, {pipeline_mode = #tpu.pipeline_mode<synchronous>, transform_indices = @transform_3, window_bounds = array<i64: 120, 640>}, {transform_indices = @transform_4, window_bounds = array<i64: 1, 640>}]} {
    %c0 = arith.constant 0 : index
    %c0_0 = arith.constant 0 : index
    %0 = vector.load %arg1[%c0, %c0_0] : memref<1x20xi32, #tpu.memory_space<vmem>>, vector<1x20xi32>
    %1 = tpu.iota {dimensions = array<i32: 1>} : vector<1x20xi32>
    %c6_i32 = arith.constant 6 : i32
    %2 = vector.broadcast %c6_i32 : i32 to vector<1x20xi32>
    %3 = arith.muli %1, %2 : vector<1x20xi32>
    %c0_i32 = arith.constant 0 : i32
    %4 = vector.broadcast %c0_i32 : i32 to vector<1x20xi32>
    %5 = arith.cmpi sge, %0, %4 : vector<1x20xi32>
    %c6_i32_1 = arith.constant 6 : i32
    %6 = vector.broadcast %c6_i32_1 : i32 to vector<1x20xi32>
    %7 = arith.cmpi slt, %0, %6 : vector<1x20xi32>
    %8 = arith.andi %5, %7 : vector<1x20xi1>
    %9 = arith.addi %0, %3 : vector<1x20xi32>
    %c-1_i32 = arith.constant -1 : i32
    %10 = vector.broadcast %c-1_i32 : i32 to vector<1x20xi32>
    %11 = arith.select %8, %9, %10 : vector<1x20xi1>, vector<1x20xi32>
    %12 = arith.sitofp %11 : vector<1x20xi32> to vector<1x20xf32>
    %c0_2 = arith.constant 0 : index
    %c0_3 = arith.constant 0 : index
    %13 = vector.load %arg2[%c0_2, %c0_3] : memref<20x120xf32, #tpu.memory_space<vmem>>, vector<20x120xf32>
    %cst = arith.constant dense<0.000000e+00> : vector<1x120xf32>
    %14 = tpu.matmul %12, %13, %cst {dimension_numbers = #tpu.dot_dimension_numbers<[1], [0], [0], [1], [0, 0, 1, 1], [], []>} : vector<1x20xf32>, vector<20x120xf32>, vector<1x120xf32> -> vector<1x120xf32>
    %15 = tpu.iota {dimensions = array<i32: 1>} : vector<1x120xi32>
    %16 = arith.sitofp %15 : vector<1x120xi32> to vector<1x120xf32>
    %17 = arith.subf %14, %16 : vector<1x120xf32>
    %18 = math.absf %17 : vector<1x120xf32>
    %cst_4 = arith.constant 5.000000e-01 : f32
    %19 = vector.broadcast %cst_4 : f32 to vector<1x120xf32>
    %20 = arith.cmpf olt, %18, %19 : vector<1x120xf32>
    %cst_5 = arith.constant 1.000000e+00 : f32
    %cst_6 = arith.constant 0.000000e+00 : f32
    %21 = vector.broadcast %cst_5 : f32 to vector<1x120xf32>
    %22 = vector.broadcast %cst_6 : f32 to vector<1x120xf32>
    %23 = arith.select %20, %21, %22 : vector<1x120xi1>, vector<1x120xf32>
    %24 = arith.truncf %23 : vector<1x120xf32> to vector<1x120xbf16>
    %c0_7 = arith.constant 0 : index
    %c0_8 = arith.constant 0 : index
    %25 = vector.load %arg3[%c0_7, %c0_8] : memref<120x640xbf16, #tpu.memory_space<vmem>>, vector<120x640xbf16>
    %cst_9 = arith.constant dense<0.000000e+00> : vector<1x640xf32>
    %26 = tpu.matmul %24, %25, %cst_9 {dimension_numbers = #tpu.dot_dimension_numbers<[1], [0], [0], [1], [0, 0, 1, 1], [], []>} : vector<1x120xbf16>, vector<120x640xbf16>, vector<1x640xf32> -> vector<1x640xf32>
    %c0_10 = arith.constant 0 : index
    %c0_11 = arith.constant 0 : index
    %27 = vector.load %arg4[%c0_10, %c0_11] : memref<120x640xbf16, #tpu.memory_space<vmem>>, vector<120x640xbf16>
    %cst_12 = arith.constant dense<0.000000e+00> : vector<1x640xf32>
    %28 = tpu.matmul %24, %27, %cst_12 {dimension_numbers = #tpu.dot_dimension_numbers<[1], [0], [0], [1], [0, 0, 1, 1], [], []>} : vector<1x120xbf16>, vector<120x640xbf16>, vector<1x640xf32> -> vector<1x640xf32>
    %29 = arith.addf %26, %28 : vector<1x640xf32>
    %c0_13 = arith.constant 0 : index
    %c0_14 = arith.constant 0 : index
    %30 = vector.load %arg5[%c0_13, %c0_14] : memref<1x640xf32, #tpu.memory_space<vmem>>, vector<1x640xf32>
    tpu.vector_store %arg5[%c0_13, %c0_14], %29 {strides = array<i32>} : memref<1x640xf32, #tpu.memory_space<vmem>>, vector<1x640xf32>,
    return
  }
  func.func @transform_0(%arg0: i32) -> (i32, i32) {
    %c0_i32 = arith.constant 0 : i32
    %c0_i32_0 = arith.constant 0 : i32
    return %arg0, %c0_i32 : i32, i32
  }
  func.func @transform_1(%arg0: i32) -> (i32, i32) {
    %c0_i32 = arith.constant 0 : i32
    %c0_i32_0 = arith.constant 0 : i32
    %c0_i32_1 = arith.constant 0 : i32
    return %c0_i32, %c0_i32_0 : i32, i32
  }
  func.func @transform_2(%arg0: i32) -> (i32, i32) {
    %c0_i32 = arith.constant 0 : i32
    %c0_i32_0 = arith.constant 0 : i32
    %c0_i32_1 = arith.constant 0 : i32
    return %c0_i32, %c0_i32_0 : i32, i32
  }
  func.func @transform_3(%arg0: i32) -> (i32, i32) {
    %c0_i32 = arith.constant 0 : i32
    %c0_i32_0 = arith.constant 0 : i32
    %c0_i32_1 = arith.constant 0 : i32
    return %c0_i32, %c0_i32_0 : i32, i32
  }
  func.func @transform_4(%arg0: i32) -> (i32, i32) {
    %c0_i32 = arith.constant 0 : i32
    %c0_i32_0 = arith.constant 0 : i32
    return %arg0, %c0_i32 : i32, i32
  }
}

</mosaic_0001>

<llo_original>
// kernel: forward.1
$region0: #{forward.1}
  #allocation0 [shape = 'u32[]', space=smem, size = 0x4, offset = 0x4, fixed_abs, tag = 'smem constant byte address 0x4 - core index']
  #allocation1 [shape = 'u32[144,128]{1,0:T(1,128)}', space=vmem, size = 0x12000, scoped, tag = 'internal scratch']
  %s0 = inlined_call_operand.vmem [shape: s32[1,20], index: 0, kind: input, shape index: {}]
  %s1 = inlined_call_operand.hbm [shape: f32[20,120], index: 1, kind: input, shape index: {}]
  %s2 = inlined_call_operand.hbm [shape: bf16[120,640], index: 2, kind: input, shape index: {}]
  %s3 = inlined_call_operand.hbm [shape: bf16[120,640], index: 3, kind: input, shape index: {}]
  %s4 = inlined_call_operand.vmem [shape: f32[1,640], index: 4, kind: output, shape index: {}]
  %s5 = sld [smem:[#allocation0]]
  $region38: #{forward.1} parent=0
    _
  %s7 = ssub.s32 1, %s5
  %s8 = scalar_select 0, %s7, %s5
  $region1: #{forward.1} parent=0
    #allocation2 [shape = 'u8[12288]{0}', space=vmem, size = 0x3000, scoped, tag = 'input window, operand 1, single buffered']
    #allocation3 [shape = 's32[1]{0}', space=sflag, size = 0x4, scoped, tag = 'scoped memory for forward.1']
    #allocation4 [shape = 'u8[153600]{0}', space=vmem, size = 0x25800, scoped, tag = 'input window, operand 2, single buffered']
    #allocation5 [shape = 's32[1]{0}', space=sflag, size = 0x4, scoped, tag = 'scoped memory for forward.1']
    #allocation6 [shape = 'u8[153600]{0}', space=vmem, size = 0x25800, scoped, tag = 'input window, operand 3, single buffered']
    %9 = vsyncpa [#allocation3], 0
    %10 = vsyncpa [#allocation5], 0
    // Predicated region
    $region2: #{forward.1} parent=1 // pred_check
      _
    $region3: #{forward.1} parent=1 // pred_check_branch
      %12 = sbr.rel (0) target = $region5
    $region4: #{forward.1} parent=1 // pred_region
      _
    $region5: #{forward.1} parent=1 // pred_fallthru
      _
    // Predicated region
    $region6: #{forward.1} parent=1 // pred_check
      _
    $region7: #{forward.1} parent=1 // pred_check_branch
      %14 = sbr.rel (0) target = $region9
    $region8: #{forward.1} parent=1 // pred_region
      %s16 = ssub.s32 384, 384
      %17 = vsyncadd [#allocation3], %s16
      %s18 = sshll.u32 [#allocation2], 4
      %s19 = int_to_ptr.vmem [resolvable:$true] %s18
      %24 = dma.hbm_to_vmem [thread:$0]  %s1, 384, %s19, [#allocation3], 128, 128, 8
    $region9: #{forward.1} parent=1 // pred_fallthru
      _
    // Predicated region
    $region10: #{forward.1} parent=1 // pred_check
      _
    $region11: #{forward.1} parent=1 // pred_check_branch
      %26 = sbr.rel (0) target = $region13
    $region12: #{forward.1} parent=1 // pred_region
      %s28 = ssub.s32 4800, 4800
      %29 = vsyncadd [#allocation5], %s28
      %s30 = sshll.u32 [#allocation4], 4
      %s31 = int_to_ptr.vmem [resolvable:$true] %s30
      %36 = dma.hbm_to_vmem [thread:$0]  %s2, 4800, %s31, [#allocation5], 320, 320, 20
    $region13: #{forward.1} parent=1 // pred_fallthru
      _
    // Predicated region
    $region14: #{forward.1} parent=1 // pred_check
      _
    $region15: #{forward.1} parent=1 // pred_check_branch
      %38 = sbr.rel (0) target = $region17
    $region16: #{forward.1} parent=1 // pred_region
      %s40 = ssub.s32 4800, 4800
      %41 = vsyncadd [#allocation5], %s40
      %s42 = sshll.u32 [#allocation6], 4
      %s43 = int_to_ptr.vmem [resolvable:$true] %s42
      %48 = dma.hbm_to_vmem [thread:$0]  %s3, 4800, %s43, [#allocation5], 320, 320, 20
    $region17: #{forward.1} parent=1 // pred_fallthru
      _
    // Predicated region
    $region18: #{forward.1} parent=1 // pred_check
      _
    $region19: #{forward.1} parent=1 // pred_check_branch
      %50 = sbr.rel (0) target = $region21
    $region20: #{forward.1} parent=1 // pred_region
      %51 = dma.done [#allocation3], 384
    $region21: #{forward.1} parent=1 // pred_fallthru
      _
    // Predicated region
    $region22: #{forward.1} parent=1 // pred_check
      _
    $region23: #{forward.1} parent=1 // pred_check_branch
      %53 = sbr.rel (0) target = $region25
    $region24: #{forward.1} parent=1 // pred_region
      %54 = dma.done [#allocation5], 4800
    $region25: #{forward.1} parent=1 // pred_fallthru
      _
    // Predicated region
    $region26: #{forward.1} parent=1 // pred_check
      _
    $region27: #{forward.1} parent=1 // pred_check_branch
      %56 = sbr.rel (0) target = $region29
    $region28: #{forward.1} parent=1 // pred_region
      %57 = dma.done [#allocation5], 4800
    $region29: #{forward.1} parent=1 // pred_fallthru
      _
    %v59 = vld [vmem:[%s0] sm:$0x1]
    %v60 = vlaneseq
    %v61 = vand.u32 %v60, 127
    %v62 = vmul.u32 %v61, 6
    %vm63 = vcmp.ge.s32.totalorder %v59, 0
    %vm64 = vcmp.lt.s32.totalorder %v59, 6
    %vm65 = vmand %vm63, %vm64
    %v66 = vadd.s32 %v59, %v62
    %v67 = vsel %vm65, %v66, 4294967295
    %v68 = vcvt.s32.f32 %v67
    %v69 = vld [vmem:[#allocation2] sm:$0xff]
    %v70 = vld [vmem:[#allocation2 + $0x8] sm:$0xff]
    %v71 = vld [vmem:[#allocation2 + $0x10] sm:$0xf]
    %vm72 = vcmask 162816
    %v74 = vsel %vm72, %v68, 0
    %vm76 = vcmask 1043456
    %v78 = vsel %vm76, %v71, 0
    %80 = vmatprep.subr.mxu0 0.0
    %81 = vmatpush1.msra.mxu0 %v69
    %82 = vmatprep.subr.mxu0 0.0
    %83 = vmatpush1.msra.mxu0 %v70
    %84 = vmatprep.subr.mxu0 0.0
    %85 = vmatpush1.msra.mxu0 %v78
    %86 = vmatprep.subr.mxu0 0.0
    %87 = vmatpush1.msra.mxu0 0.0
    %88 = vmatprep.subr.mxu0 0.0
    %89 = vmatpush1.msra.mxu0 0.0
    %90 = vmatprep.subr.mxu0 0.0
    %91 = vmatpush1.msra.mxu0 0.0
    %92 = vmatprep.subr.mxu0 0.0
    %93 = vmatpush1.msra.mxu0 0.0
    %94 = vmatprep.subr.mxu0 0.0
    %95 = vmatpush1.msra.mxu0 0.0
    %96 = vmatprep.subr.mxu0 0.0
    %97 = vmatpush1.msra.mxu0 0.0
    %98 = vmatprep.subr.mxu0 0.0
    %99 = vmatpush1.msra.mxu0 0.0
    %100 = vmatprep.subr.mxu0 0.0
    %101 = vmatpush1.msra.mxu0 0.0
    %102 = vmatprep.subr.mxu0 0.0
    %103 = vmatpush1.msra.mxu0 0.0
    %104 = vmatprep.subr.mxu0 0.0
    %105 = vmatpush1.msra.mxu0 0.0
    %106 = vmatprep.subr.mxu0 0.0
    %107 = vmatpush1.msra.mxu0 0.0
    %108 = vmatprep.subr.mxu0 0.0
    %109 = vmatpush1.msra.mxu0 0.0
    %110 = vmatprep.subr.mxu0 0.0
    %111 = vmatpush1.msra.mxu0 0.0
    %112 = vmatprep.subr.mxu0 0.0
    %113 = vmatpush1.msra.mxu0 0.0
    %114 = vmatprep.subr.mxu0 0.0
    %115 = vmatpush1.msra.mxu0 0.0
    %116 = vmatprep.subr.mxu0 0.0
    %117 = vmatpush1.msra.mxu0 0.0
    %118 = vmatprep.subr.mxu0 0.0
    %119 = vmatpush1.msra.mxu0 0.0
    %120 = vmatprep.subr.mxu0 0.0
    %121 = vmatpush1.msra.mxu0 0.0
    %122 = vmatprep.subr.mxu0 0.0
    %123 = vmatpush1.msra.mxu0 0.0
    %124 = vmatprep.subr.mxu0 0.0
    %125 = vmatpush1.msra.mxu0 0.0
    %126 = vmatprep.subr.mxu0 0.0
    %127 = vmatpush1.msra.mxu0 0.0
    %128 = vmatprep.subr.mxu0 0.0
    %129 = vmatpush1.msra.mxu0 0.0
    %130 = vmatprep.subr.mxu0 0.0
    %131 = vmatpush1.msra.mxu0 0.0
    %132 = vmatprep.subr.mxu0 0.0
    %133 = vmatpush1.msra.mxu0 0.0
    %134 = vmatprep.subr.mxu0 0.0
    %135 = vmatpush1.msra.mxu0 0.0
    %136 = vmatprep.subr.mxu0 0.0
    %137 = vmatpush1.msra.mxu0 0.0
    %138 = vmatprep.subr.mxu0 0.0
    %139 = vmatpush1.msra.mxu0 0.0
    %140 = vmatprep.subr.mxu0 0.0
    %141 = vmatpush1.msra.mxu0 0.0
    %142 = vmatprep.subr.mxu0 0.0
    %143 = vmatpush1.msra.mxu0 0.0
    %144 = vmatprep.mubr.f32.mxu0 0.0
    %145 = vmatmul.mubr.f32.gmra.mrb[0].mxu0 %v74
    %v146 = vpop.f32.mrb[0].mxu0
    %v147 = vadd.f32 0.0, %v146
    %v148 = vpop.f32.mrb[0].mxu0
    %149 = vdwg.mxu0
    %v150 = vcvt.s32.f32 %v61
    %v151 = vsub.f32 %v147, %v150
    %v152 = vand.u32 2147483647, %v151
    %vm153 = vcmp.lt.f32.partialorder %v152, 0.5
    %v154 = vsel %vm153, 1.0, 0.0
    %v155 = vpack.c.bf16 %v154, %v154
    %v156 = vld [vmem:[#allocation4] sm:$0xff]
    %v157 = vld [vmem:[#allocation4 + $0x8] sm:$0xff]
    %v158 = vld [vmem:[#allocation4 + $0x10] sm:$0xf]
    %v159 = vld [vmem:[#allocation4 + $0x14] sm:$0xff]
    %v160 = vld [vmem:[#allocation4 + $0x1c] sm:$0xff]
    %v161 = vld [vmem:[#allocation4 + $0x24] sm:$0xf]
    %v162 = vld [vmem:[#allocation4 + $0x28] sm:$0xff]
    %v163 = vld [vmem:[#allocation4 + $0x30] sm:$0xff]
    %v164 = vld [vmem:[#allocation4 + $0x38] sm:$0xf]
    %v165 = vld [vmem:[#allocation4 + $0x3c] sm:$0xff]
    %v166 = vld [vmem:[#allocation4 + $0x44] sm:$0xff]
    %v167 = vld [vmem:[#allocation4 + $0x4c] sm:$0xf]
    %v168 = vld [vmem:[#allocation4 + $0x50] sm:$0xff]
    %v169 = vld [vmem:[#allocation4 + $0x58] sm:$0xff]
    %v170 = vld [vmem:[#allocation4 + $0x60] sm:$0xf]
    %v171 = vld [vmem:[#allocation4 + $0x64] sm:$0xff]
    %v172 = vld [vmem:[#allocation4 + $0x6c] sm:$0xff]
    %v173 = vld [vmem:[#allocation4 + $0x74] sm:$0xf]
    %v174 = vld [vmem:[#allocation4 + $0x78] sm:$0xff]
    %v175 = vld [vmem:[#allocation4 + $0x80] sm:$0xff]
    %v176 = vld [vmem:[#allocation4 + $0x88] sm:$0xf]
    %v177 = vld [vmem:[#allocation4 + $0x8c] sm:$0xff]
    %v178 = vld [vmem:[#allocation4 + $0x94] sm:$0xff]
    %v179 = vld [vmem:[#allocation4 + $0x9c] sm:$0xf]
    %v180 = vld [vmem:[#allocation4 + $0xa0] sm:$0xff]
    %v181 = vld [vmem:[#allocation4 + $0xa8] sm:$0xff]
    %v182 = vld [vmem:[#allocation4 + $0xb0] sm:$0xf]
    %v183 = vld [vmem:[#allocation4 + $0xb4] sm:$0xff]
    %v184 = vld [vmem:[#allocation4 + $0xbc] sm:$0xff]
    %v185 = vld [vmem:[#allocation4 + $0xc4] sm:$0xf]
    %v186 = vld [vmem:[#allocation4 + $0xc8] sm:$0xff]
    %v187 = vld [vmem:[#allocation4 + $0xd0] sm:$0xff]
    %v188 = vld [vmem:[#allocation4 + $0xd8] sm:$0xf]
    %v189 = vld [vmem:[#allocation4 + $0xdc] sm:$0xff]
    %v190 = vld [vmem:[#allocation4 + $0xe4] sm:$0xff]
    %v191 = vld [vmem:[#allocation4 + $0xec] sm:$0xf]
    %v192 = vld [vmem:[#allocation4 + $0xf0] sm:$0xff]
    %v193 = vld [vmem:[#allocation4 + $0xf8] sm:$0xff]
    %v194 = vld [vmem:[#allocation4 + $0x100] sm:$0xf]
    %v195 = vld [vmem:[#allocation4 + $0x104] sm:$0xff]
    %v196 = vld [vmem:[#allocation4 + $0x10c] sm:$0xff]
    %v197 = vld [vmem:[#allocation4 + $0x114] sm:$0xf]
    %v198 = vld [vmem:[#allocation4 + $0x118] sm:$0xff]
    %v199 = vld [vmem:[#allocation4 + $0x120] sm:$0xff]
    %v200 = vld [vmem:[#allocation4 + $0x128] sm:$0xf]
    %v201 = vld [vmem:[#allocation6] sm:$0xff]
    %v202 = vld [vmem:[#allocation6 + $0x8] sm:$0xff]
    %v203 = vld [vmem:[#allocation6 + $0x10] sm:$0xf]
    %v204 = vld [vmem:[#allocation6 + $0x14] sm:$0xff]
    %v205 = vld [vmem:[#allocation6 + $0x1c] sm:$0xff]
    %v206 = vld [vmem:[#allocation6 + $0x24] sm:$0xf]
    %v207 = vld [vmem:[#allocation6 + $0x28] sm:$0xff]
    %v208 = vld [vmem:[#allocation6 + $0x30] sm:$0xff]
    %v209 = vld [vmem:[#allocation6 + $0x38] sm:$0xf]
    %v210 = vld [vmem:[#allocation6 + $0x3c] sm:$0xff]
    %v211 = vld [vmem:[#allocation6 + $0x44] sm:$0xff]
    %v212 = vld [vmem:[#allocation6 + $0x4c] sm:$0xf]
    %v213 = vld [vmem:[#allocation6 + $0x50] sm:$0xff]
    %v214 = vld [vmem:[#allocation6 + $0x58] sm:$0xff]
    %v215 = vld [vmem:[#allocation6 + $0x60] sm:$0xf]
    %v216 = vld [vmem:[#allocation6 + $0x64] sm:$0xff]
    %v217 = vld [vmem:[#allocation6 + $0x6c] sm:$0xff]
    %v218 = vld [vmem:[#allocation6 + $0x74] sm:$0xf]
    %v219 = vld [vmem:[#allocation6 + $0x78] sm:$0xff]
    %v220 = vld [vmem:[#allocation6 + $0x80] sm:$0xff]
    %v221 = vld [vmem:[#allocation6 + $0x88] sm:$0xf]
    %v222 = vld [vmem:[#allocation6 + $0x8c] sm:$0xff]
    %v223 = vld [vmem:[#allocation6 + $0x94] sm:$0xff]
    %v224 = vld [vmem:[#allocation6 + $0x9c] sm:$0xf]
    %v225 = vld [vmem:[#allocation6 + $0xa0] sm:$0xff]
    %v226 = vld [vmem:[#allocation6 + $0xa8] sm:$0xff]
    %v227 = vld [vmem:[#allocation6 + $0xb0] sm:$0xf]
    %v228 = vld [vmem:[#allocation6 + $0xb4] sm:$0xff]
    %v229 = vld [vmem:[#allocation6 + $0xbc] sm:$0xff]
    %v230 = vld [vmem:[#allocation6 + $0xc4] sm:$0xf]
    %v231 = vld [vmem:[#allocation6 + $0xc8] sm:$0xff]
    %v232 = vld [vmem:[#allocation6 + $0xd0] sm:$0xff]
    %v233 = vld [vmem:[#allocation6 + $0xd8] sm:$0xf]
    %v234 = vld [vmem:[#allocation6 + $0xdc] sm:$0xff]
    %v235 = vld [vmem:[#allocation6 + $0xe4] sm:$0xff]
    %v236 = vld [vmem:[#allocation6 + $0xec] sm:$0xf]
    %v237 = vld [vmem:[#allocation6 + $0xf0] sm:$0xff]
    %v238 = vld [vmem:[#allocation6 + $0xf8] sm:$0xff]
    %v239 = vld [vmem:[#allocation6 + $0x100] sm:$0xf]
    %v240 = vld [vmem:[#allocation6 + $0x104] sm:$0xff]
    %v241 = vld [vmem:[#allocation6 + $0x10c] sm:$0xff]
    %v242 = vld [vmem:[#allocation6 + $0x114] sm:$0xf]
    %v243 = vld [vmem:[#allocation6 + $0x118] sm:$0xff]
    %v244 = vld [vmem:[#allocation6 + $0x120] sm:$0xff]
    %v245 = vld [vmem:[#allocation6 + $0x128] sm:$0xf]
    %v291 = vunpack.c.l.b16 %v201
    %v292 = vunpack.c.h.b16 %v201
    %v293 = vunpack.c.l.b16 %v202
    %v294 = vunpack.c.h.b16 %v202
    %v295 = vunpack.c.l.b16 %v203
    %v296 = vunpack.c.l.b16 %v204
    %v297 = vunpack.c.h.b16 %v204
    %v298 = vunpack.c.l.b16 %v205
    %v299 = vunpack.c.h.b16 %v205
    %v300 = vunpack.c.l.b16 %v206
    %v301 = vunpack.c.l.b16 %v207
    %v302 = vunpack.c.h.b16 %v207
    %v303 = vunpack.c.l.b16 %v208
    %v304 = vunpack.c.h.b16 %v208
    %v305 = vunpack.c.l.b16 %v209
    %v306 = vunpack.c.l.b16 %v210
    %v307 = vunpack.c.h.b16 %v210
    %v308 = vunpack.c.l.b16 %v211
    %v309 = vunpack.c.h.b16 %v211
    %v310 = vunpack.c.l.b16 %v212
    %v311 = vunpack.c.l.b16 %v213
    %v312 = vunpack.c.h.b16 %v213
    %v313 = vunpack.c.l.b16 %v214
    %v314 = vunpack.c.h.b16 %v214
    %v315 = vunpack.c.l.b16 %v215
    %v316 = vunpack.c.l.b16 %v216
    %v317 = vunpack.c.h.b16 %v216
    %v318 = vunpack.c.l.b16 %v217
    %v319 = vunpack.c.h.b16 %v217
    %v320 = vunpack.c.l.b16 %v218
    %v321 = vunpack.c.l.b16 %v219
    %v322 = vunpack.c.h.b16 %v219
    %v323 = vunpack.c.l.b16 %v220
    %v324 = vunpack.c.h.b16 %v220
    %v325 = vunpack.c.l.b16 %v221
    %v326 = vunpack.c.l.b16 %v222
    %v327 = vunpack.c.h.b16 %v222
    %v328 = vunpack.c.l.b16 %v223
    %v329 = vunpack.c.h.b16 %v223
    %v330 = vunpack.c.l.b16 %v224
    %v331 = vunpack.c.l.b16 %v225
    %v332 = vunpack.c.h.b16 %v225
    %v333 = vunpack.c.l.b16 %v226
    %v334 = vunpack.c.h.b16 %v226
    %v335 = vunpack.c.l.b16 %v227
    %v336 = vunpack.c.l.b16 %v228
    %v337 = vunpack.c.h.b16 %v228
    %v338 = vunpack.c.l.b16 %v229
    %v339 = vunpack.c.h.b16 %v229
    %v340 = vunpack.c.l.b16 %v230
    %v341 = vunpack.c.l.b16 %v231
    %v342 = vunpack.c.h.b16 %v231
    %v343 = vunpack.c.l.b16 %v232
    %v344 = vunpack.c.h.b16 %v232
    %v345 = vunpack.c.l.b16 %v233
    %v346 = vunpack.c.l.b16 %v234
    %v347 = vunpack.c.h.b16 %v234
    %v348 = vunpack.c.l.b16 %v235
    %v349 = vunpack.c.h.b16 %v235
    %v350 = vunpack.c.l.b16 %v236
    %v351 = vunpack.c.l.b16 %v237
    %v352 = vunpack.c.h.b16 %v237
    %v353 = vunpack.c.l.b16 %v238
    %v354 = vunpack.c.h.b16 %v238
    %v355 = vunpack.c.l.b16 %v239
    %v356 = vunpack.c.l.b16 %v240
    %v357 = vunpack.c.h.b16 %v240
    %v358 = vunpack.c.l.b16 %v241
    %v359 = vunpack.c.h.b16 %v241
    %v360 = vunpack.c.l.b16 %v242
    %v361 = vunpack.c.l.b16 %v243
    %v362 = vunpack.c.h.b16 %v243
    %v363 = vunpack.c.l.b16 %v244
    %v364 = vunpack.c.h.b16 %v244
    %v365 = vunpack.c.l.b16 %v245
    %v366 = vpack.c.b16 %v296, %v291
    %v367 = vpack.c.b16 %v297, %v292
    %v368 = vpack.c.b16 %v298, %v293
    %v369 = vpack.c.b16 %v299, %v294
    %v370 = vpack.c.b16 %v300, %v295
    %v371 = vpack.c.b16 %v306, %v301
    %v372 = vpack.c.b16 %v307, %v302
    %v373 = vpack.c.b16 %v308, %v303
    %v374 = vpack.c.b16 %v309, %v304
    %v375 = vpack.c.b16 %v310, %v305
    %v376 = vpack.c.b16 %v316, %v311
    %v377 = vpack.c.b16 %v317, %v312
    %v378 = vpack.c.b16 %v318, %v313
    %v379 = vpack.c.b16 %v319, %v314
    %v380 = vpack.c.b16 %v320, %v315
    %v381 = vpack.c.b16 %v326, %v321
    %v382 = vpack.c.b16 %v327, %v322
    %v383 = vpack.c.b16 %v328, %v323
    %v384 = vpack.c.b16 %v329, %v324
    %v385 = vpack.c.b16 %v330, %v325
    %v386 = vpack.c.b16 %v336, %v331
    %v387 = vpack.c.b16 %v337, %v332
    %v388 = vpack.c.b16 %v338, %v333
    %v389 = vpack.c.b16 %v339, %v334
    %v390 = vpack.c.b16 %v340, %v335
    %v391 = vpack.c.b16 %v346, %v341
    %v392 = vpack.c.b16 %v347, %v342
    %v393 = vpack.c.b16 %v348, %v343
    %v394 = vpack.c.b16 %v349, %v344
    %v395 = vpack.c.b16 %v350, %v345
    %v396 = vpack.c.b16 %v356, %v351
    %v397 = vpack.c.b16 %v357, %v352
    %v398 = vpack.c.b16 %v358, %v353
    %v399 = vpack.c.b16 %v359, %v354
    %v400 = vpack.c.b16 %v360, %v355
    %v401 = vpack.c.b16 %v361, %v361
    %v402 = vpack.c.b16 %v362, %v362
    %v403 = vpack.c.b16 %v363, %v363
    %v404 = vpack.c.b16 %v364, %v364
    %v405 = vpack.c.b16 %v365, %v365
    %vm441 = vcmask 982016
    %v443 = vsel %vm441, %v155, 0
    %v446 = vsel %vm76, %v401, 0
    %v449 = vsel %vm76, %v402, 0
    %v452 = vsel %vm76, %v403, 0
    %v455 = vsel %vm76, %v404, 0
    %v458 = vsel %vm76, %v405, 0
    %460 = vmatprep.subr.bf16.mxu0 %v367
    %461 = vmatpush1.bf16.msra.mxu0 %v366
    %462 = vmatprep.subr.bf16.mxu0 %v372
    %463 = vmatpush1.bf16.msra.mxu0 %v371
    %464 = vmatprep.subr.bf16.mxu0 %v377
    %465 = vmatpush1.bf16.msra.mxu0 %v376
    %466 = vmatprep.subr.bf16.mxu0 %v382
    %467 = vmatpush1.bf16.msra.mxu0 %v381
    %468 = vmatprep.subr.bf16.mxu0 %v387
    %469 = vmatpush1.bf16.msra.mxu0 %v386
    %470 = vmatprep.subr.bf16.mxu0 %v392
    %471 = vmatpush1.bf16.msra.mxu0 %v391
    %472 = vmatprep.subr.bf16.mxu0 %v397
    %473 = vmatpush1.bf16.msra.mxu0 %v396
    %474 = vmatprep.subr.bf16.mxu0 %v449
    %475 = vmatpush1.bf16.msra.mxu0 %v446
    %476 = vmatprep.subr.bf16.mxu0 0
    %477 = vmatpush1.bf16.msra.mxu0 0
    %478 = vmatprep.subr.bf16.mxu0 0
    %479 = vmatpush1.bf16.msra.mxu0 0
    %480 = vmatprep.subr.bf16.mxu0 0
    %481 = vmatpush1.bf16.msra.mxu0 0
    %482 = vmatprep.subr.bf16.mxu0 0
    %483 = vmatpush1.bf16.msra.mxu0 0
    %484 = vmatprep.subr.bf16.mxu0 0
    %485 = vmatpush1.bf16.msra.mxu0 0
    %486 = vmatprep.subr.bf16.mxu0 0
    %487 = vmatpush1.bf16.msra.mxu0 0
    %488 = vmatprep.subr.bf16.mxu0 0
    %489 = vmatpush1.bf16.msra.mxu0 0
    %490 = vmatprep.subr.bf16.mxu0 0
    %491 = vmatpush1.bf16.msra.mxu0 0
    %492 = vmatprep.mubr.bf16.mxu0 0
    %493 = vmatmul.mubr.bf16.gmra.mrb[0].mxu0 %v443
    %v494 = vpop.f32.mrb[0].mxu0
    %v495 = vadd.f32 0.0, %v494
    %v496 = vpop.f32.mrb[0].mxu0
    %v497 = vadd.f32 0.0, %v496
    %v498 = vpop.f32.mrb[0].mxu0
    %v499 = vpop.f32.mrb[0].mxu0
    %500 = vdwg.mxu0
    %501 = vmatprep.subr.bf16.mxu0 %v369
    %502 = vmatpush1.bf16.msra.mxu0 %v368
    %503 = vmatprep.subr.bf16.mxu0 %v374
    %504 = vmatpush1.bf16.msra.mxu0 %v373
    %505 = vmatprep.subr.bf16.mxu0 %v379
    %506 = vmatpush1.bf16.msra.mxu0 %v378
    %507 = vmatprep.subr.bf16.mxu0 %v384
    %508 = vmatpush1.bf16.msra.mxu0 %v383
    %509 = vmatprep.subr.bf16.mxu0 %v389
    %510 = vmatpush1.bf16.msra.mxu0 %v388
    %511 = vmatprep.subr.bf16.mxu0 %v394
    %512 = vmatpush1.bf16.msra.mxu0 %v393
    %513 = vmatprep.subr.bf16.mxu0 %v399
    %514 = vmatpush1.bf16.msra.mxu0 %v398
    %515 = vmatprep.subr.bf16.mxu0 %v455
    %516 = vmatpush1.bf16.msra.mxu0 %v452
    %517 = vmatprep.subr.bf16.mxu0 0
    %518 = vmatpush1.bf16.msra.mxu0 0
    %519 = vmatprep.subr.bf16.mxu0 0
    %520 = vmatpush1.bf16.msra.mxu0 0
    %521 = vmatprep.subr.bf16.mxu0 0
    %522 = vmatpush1.bf16.msra.mxu0 0
    %523 = vmatprep.subr.bf16.mxu0 0
    %524 = vmatpush1.bf16.msra.mxu0 0
    %525 = vmatprep.subr.bf16.mxu0 0
    %526 = vmatpush1.bf16.msra.mxu0 0
    %527 = vmatprep.subr.bf16.mxu0 0
    %528 = vmatpush1.bf16.msra.mxu0 0
    %529 = vmatprep.subr.bf16.mxu0 0
    %530 = vmatpush1.bf16.msra.mxu0 0
    %531 = vmatprep.subr.bf16.mxu0 0
    %532 = vmatpush1.bf16.msra.mxu0 0
    %533 = vmatprep.mubr.bf16.mxu0 0
    %534 = vmatmul.mubr.bf16.gmra.mrb[0].mxu0 %v443
    %v535 = vpop.f32.mrb[0].mxu0
    %v536 = vadd.f32 0.0, %v535
    %v537 = vpop.f32.mrb[0].mxu0
    %v538 = vadd.f32 0.0, %v537
    %v539 = vpop.f32.mrb[0].mxu0
    %v540 = vpop.f32.mrb[0].mxu0
    %541 = vdwg.mxu0
    %542 = vmatprep.subr.bf16.mxu0 0
    %543 = vmatpush1.bf16.msra.mxu0 %v370
    %544 = vmatprep.subr.bf16.mxu0 0
    %545 = vmatpush1.bf16.msra.mxu0 %v375
    %546 = vmatprep.subr.bf16.mxu0 0
    %547 = vmatpush1.bf16.msra.mxu0 %v380
    %548 = vmatprep.subr.bf16.mxu0 0
    %549 = vmatpush1.bf16.msra.mxu0 %v385
    %550 = vmatprep.subr.bf16.mxu0 0
    %551 = vmatpush1.bf16.msra.mxu0 %v390
    %552 = vmatprep.subr.bf16.mxu0 0
    %553 = vmatpush1.bf16.msra.mxu0 %v395
    %554 = vmatprep.subr.bf16.mxu0 0
    %555 = vmatpush1.bf16.msra.mxu0 %v400
    %556 = vmatprep.subr.bf16.mxu0 0
    %557 = vmatpush1.bf16.msra.mxu0 %v458
    %558 = vmatprep.subr.bf16.mxu0 0
    %559 = vmatpush1.bf16.msra.mxu0 0
    %560 = vmatprep.subr.bf16.mxu0 0
    %561 = vmatpush1.bf16.msra.mxu0 0
    %562 = vmatprep.subr.bf16.mxu0 0
    %563 = vmatpush1.bf16.msra.mxu0 0
    %564 = vmatprep.subr.bf16.mxu0 0
    %565 = vmatpush1.bf16.msra.mxu0 0
    %566 = vmatprep.subr.bf16.mxu0 0
    %567 = vmatpush1.bf16.msra.mxu0 0
    %568 = vmatprep.subr.bf16.mxu0 0
    %569 = vmatpush1.bf16.msra.mxu0 0
    %570 = vmatprep.subr.bf16.mxu0 0
    %571 = vmatpush1.bf16.msra.mxu0 0
    %572 = vmatprep.subr.bf16.mxu0 0
    %573 = vmatpush1.bf16.msra.mxu0 0
    %574 = vmatprep.mubr.bf16.mxu0 0
    %575 = vmatmul.mubr.bf16.gmra.mrb[0].mxu0 %v443
    %v576 = vpop.f32.mrb[0].mxu0
    %v577 = vadd.f32 0.0, %v576
    %v578 = vpop.f32.mrb[0].mxu0
    %v579 = vpop.f32.mrb[0].mxu0
    %v580 = vpop.f32.mrb[0].mxu0
    %581 = vdwg.mxu0
    %v627 = vunpack.c.l.b16 %v156
    %v628 = vunpack.c.h.b16 %v156
    %v629 = vunpack.c.l.b16 %v157
    %v630 = vunpack.c.h.b16 %v157
    %v631 = vunpack.c.l.b16 %v158
    %v632 = vunpack.c.l.b16 %v159
    %v633 = vunpack.c.h.b16 %v159
    %v634 = vunpack.c.l.b16 %v160
    %v635 = vunpack.c.h.b16 %v160
    %v636 = vunpack.c.l.b16 %v161
    %v637 = vunpack.c.l.b16 %v162
    %v638 = vunpack.c.h.b16 %v162
    %v639 = vunpack.c.l.b16 %v163
    %v640 = vunpack.c.h.b16 %v163
    %v641 = vunpack.c.l.b16 %v164
    %v642 = vunpack.c.l.b16 %v165
    %v643 = vunpack.c.h.b16 %v165
    %v644 = vunpack.c.l.b16 %v166
    %v645 = vunpack.c.h.b16 %v166
    %v646 = vunpack.c.l.b16 %v167
    %v647 = vunpack.c.l.b16 %v168
    %v648 = vunpack.c.h.b16 %v168
    %v649 = vunpack.c.l.b16 %v169
    %v650 = vunpack.c.h.b16 %v169
    %v651 = vunpack.c.l.b16 %v170
    %v652 = vunpack.c.l.b16 %v171
    %v653 = vunpack.c.h.b16 %v171
    %v654 = vunpack.c.l.b16 %v172
    %v655 = vunpack.c.h.b16 %v172
    %v656 = vunpack.c.l.b16 %v173
    %v657 = vunpack.c.l.b16 %v174
    %v658 = vunpack.c.h.b16 %v174
    %v659 = vunpack.c.l.b16 %v175
    %v660 = vunpack.c.h.b16 %v175
    %v661 = vunpack.c.l.b16 %v176
    %v662 = vunpack.c.l.b16 %v177
    %v663 = vunpack.c.h.b16 %v177
    %v664 = vunpack.c.l.b16 %v178
    %v665 = vunpack.c.h.b16 %v178
    %v666 = vunpack.c.l.b16 %v179
    %v667 = vunpack.c.l.b16 %v180
    %v668 = vunpack.c.h.b16 %v180
    %v669 = vunpack.c.l.b16 %v181
    %v670 = vunpack.c.h.b16 %v181
    %v671 = vunpack.c.l.b16 %v182
    %v672 = vunpack.c.l.b16 %v183
    %v673 = vunpack.c.h.b16 %v183
    %v674 = vunpack.c.l.b16 %v184
    %v675 = vunpack.c.h.b16 %v184
    %v676 = vunpack.c.l.b16 %v185
    %v677 = vunpack.c.l.b16 %v186
    %v678 = vunpack.c.h.b16 %v186
    %v679 = vunpack.c.l.b16 %v187
    %v680 = vunpack.c.h.b16 %v187
    %v681 = vunpack.c.l.b16 %v188
    %v682 = vunpack.c.l.b16 %v189
    %v683 = vunpack.c.h.b16 %v189
    %v684 = vunpack.c.l.b16 %v190
    %v685 = vunpack.c.h.b16 %v190
    %v686 = vunpack.c.l.b16 %v191
    %v687 = vunpack.c.l.b16 %v192
    %v688 = vunpack.c.h.b16 %v192
    %v689 = vunpack.c.l.b16 %v193
    %v690 = vunpack.c.h.b16 %v193
    %v691 = vunpack.c.l.b16 %v194
    %v692 = vunpack.c.l.b16 %v195
    %v693 = vunpack.c.h.b16 %v195
    %v694 = vunpack.c.l.b16 %v196
    %v695 = vunpack.c.h.b16 %v196
    %v696 = vunpack.c.l.b16 %v197
    %v697 = vunpack.c.l.b16 %v198
    %v698 = vunpack.c.h.b16 %v198
    %v699 = vunpack.c.l.b16 %v199
    %v700 = vunpack.c.h.b16 %v199
    %v701 = vunpack.c.l.b16 %v200
    %v702 = vpack.c.b16 %v632, %v627
    %v703 = vpack.c.b16 %v633, %v628
    %v704 = vpack.c.b16 %v634, %v629
    %v705 = vpack.c.b16 %v635, %v630
    %v706 = vpack.c.b16 %v636, %v631
    %v707 = vpack.c.b16 %v642, %v637
    %v708 = vpack.c.b16 %v643, %v638
    %v709 = vpack.c.b16 %v644, %v639
    %v710 = vpack.c.b16 %v645, %v640
    %v711 = vpack.c.b16 %v646, %v641
    %v712 = vpack.c.b16 %v652, %v647
    %v713 = vpack.c.b16 %v653, %v648
    %v714 = vpack.c.b16 %v654, %v649
    %v715 = vpack.c.b16 %v655, %v650
    %v716 = vpack.c.b16 %v656, %v651
    %v717 = vpack.c.b16 %v662, %v657
    %v718 = vpack.c.b16 %v663, %v658
    %v719 = vpack.c.b16 %v664, %v659
    %v720 = vpack.c.b16 %v665, %v660
    %v721 = vpack.c.b16 %v666, %v661
    %v722 = vpack.c.b16 %v672, %v667
    %v723 = vpack.c.b16 %v673, %v668
    %v724 = vpack.c.b16 %v674, %v669
    %v725 = vpack.c.b16 %v675, %v670
    %v726 = vpack.c.b16 %v676, %v671
    %v727 = vpack.c.b16 %v682, %v677
    %v728 = vpack.c.b16 %v683, %v678
    %v729 = vpack.c.b16 %v684, %v679
    %v730 = vpack.c.b16 %v685, %v680
    %v731 = vpack.c.b16 %v686, %v681
    %v732 = vpack.c.b16 %v692, %v687
    %v733 = vpack.c.b16 %v693, %v688
    %v734 = vpack.c.b16 %v694, %v689
    %v735 = vpack.c.b16 %v695, %v690
    %v736 = vpack.c.b16 %v696, %v691
    %v737 = vpack.c.b16 %v697, %v697
    %v738 = vpack.c.b16 %v698, %v698
    %v739 = vpack.c.b16 %v699, %v699
    %v740 = vpack.c.b16 %v700, %v700
    %v741 = vpack.c.b16 %v701, %v701
    %v778 = vsel %vm76, %v737, 0
    %v781 = vsel %vm76, %v738, 0
    %v784 = vsel %vm76, %v739, 0
    %v787 = vsel %vm76, %v740, 0
    %v790 = vsel %vm76, %v741, 0
    %792 = vmatprep.subr.bf16.mxu0 %v703
    %793 = vmatpush1.bf16.msra.mxu0 %v702
    %794 = vmatprep.subr.bf16.mxu0 %v708
    %795 = vmatpush1.bf16.msra.mxu0 %v707
    %796 = vmatprep.subr.bf16.mxu0 %v713
    %797 = vmatpush1.bf16.msra.mxu0 %v712
    %798 = vmatprep.subr.bf16.mxu0 %v718
    %799 = vmatpush1.bf16.msra.mxu0 %v717
    %800 = vmatprep.subr.bf16.mxu0 %v723
    %801 = vmatpush1.bf16.msra.mxu0 %v722
    %802 = vmatprep.subr.bf16.mxu0 %v728
    %803 = vmatpush1.bf16.msra.mxu0 %v727
    %804 = vmatprep.subr.bf16.mxu0 %v733
    %805 = vmatpush1.bf16.msra.mxu0 %v732
    %806 = vmatprep.subr.bf16.mxu0 %v781
    %807 = vmatpush1.bf16.msra.mxu0 %v778
    %808 = vmatprep.subr.bf16.mxu0 0
    %809 = vmatpush1.bf16.msra.mxu0 0
    %810 = vmatprep.subr.bf16.mxu0 0
    %811 = vmatpush1.bf16.msra.mxu0 0
    %812 = vmatprep.subr.bf16.mxu0 0
    %813 = vmatpush1.bf16.msra.mxu0 0
    %814 = vmatprep.subr.bf16.mxu0 0
    %815 = vmatpush1.bf16.msra.mxu0 0
    %816 = vmatprep.subr.bf16.mxu0 0
    %817 = vmatpush1.bf16.msra.mxu0 0
    %818 = vmatprep.subr.bf16.mxu0 0
    %819 = vmatpush1.bf16.msra.mxu0 0
    %820 = vmatprep.subr.bf16.mxu0 0
    %821 = vmatpush1.bf16.msra.mxu0 0
    %822 = vmatprep.subr.bf16.mxu0 0
    %823 = vmatpush1.bf16.msra.mxu0 0
    %824 = vmatprep.mubr.bf16.mxu0 0
    %825 = vmatmul.mubr.bf16.gmra.mrb[0].mxu0 %v443
    %v826 = vpop.f32.mrb[0].mxu0
    %v827 = vadd.f32 %v495, %v826
    %v828 = vpop.f32.mrb[0].mxu0
    %v829 = vadd.f32 %v497, %v828
    %v830 = vpop.f32.mrb[0].mxu0
    %v831 = vpop.f32.mrb[0].mxu0
    %832 = vdwg.mxu0
    %833 = vmatprep.subr.bf16.mxu0 %v705
    %834 = vmatpush1.bf16.msra.mxu0 %v704
    %835 = vmatprep.subr.bf16.mxu0 %v710
    %836 = vmatpush1.bf16.msra.mxu0 %v709
    %837 = vmatprep.subr.bf16.mxu0 %v715
    %838 = vmatpush1.bf16.msra.mxu0 %v714
    %839 = vmatprep.subr.bf16.mxu0 %v720
    %840 = vmatpush1.bf16.msra.mxu0 %v719
    %841 = vmatprep.subr.bf16.mxu0 %v725
    %842 = vmatpush1.bf16.msra.mxu0 %v724
    %843 = vmatprep.subr.bf16.mxu0 %v730
    %844 = vmatpush1.bf16.msra.mxu0 %v729
    %845 = vmatprep.subr.bf16.mxu0 %v735
    %846 = vmatpush1.bf16.msra.mxu0 %v734
    %847 = vmatprep.subr.bf16.mxu0 %v787
    %848 = vmatpush1.bf16.msra.mxu0 %v784
    %849 = vmatprep.subr.bf16.mxu0 0
    %850 = vmatpush1.bf16.msra.mxu0 0
    %851 = vmatprep.subr.bf16.mxu0 0
    %852 = vmatpush1.bf16.msra.mxu0 0
    %853 = vmatprep.subr.bf16.mxu0 0
    %854 = vmatpush1.bf16.msra.mxu0 0
    %855 = vmatprep.subr.bf16.mxu0 0
    %856 = vmatpush1.bf16.msra.mxu0 0
    %857 = vmatprep.subr.bf16.mxu0 0
    %858 = vmatpush1.bf16.msra.mxu0 0
    %859 = vmatprep.subr.bf16.mxu0 0
    %860 = vmatpush1.bf16.msra.mxu0 0
    %861 = vmatprep.subr.bf16.mxu0 0
    %862 = vmatpush1.bf16.msra.mxu0 0
    %863 = vmatprep.subr.bf16.mxu0 0
    %864 = vmatpush1.bf16.msra.mxu0 0
    %865 = vmatprep.mubr.bf16.mxu0 0
    %866 = vmatmul.mubr.bf16.gmra.mrb[0].mxu0 %v443
    %v867 = vpop.f32.mrb[0].mxu0
    %v868 = vadd.f32 %v536, %v867
    %v869 = vpop.f32.mrb[0].mxu0
    %v870 = vadd.f32 %v538, %v869
    %v871 = vpop.f32.mrb[0].mxu0
    %v872 = vpop.f32.mrb[0].mxu0
    %873 = vdwg.mxu0
    %874 = vmatprep.subr.bf16.mxu0 0
    %875 = vmatpush1.bf16.msra.mxu0 %v706
    %876 = vmatprep.subr.bf16.mxu0 0
    %877 = vmatpush1.bf16.msra.mxu0 %v711
    %878 = vmatprep.subr.bf16.mxu0 0
    %879 = vmatpush1.bf16.msra.mxu0 %v716
    %880 = vmatprep.subr.bf16.mxu0 0
    %881 = vmatpush1.bf16.msra.mxu0 %v721
    %882 = vmatprep.subr.bf16.mxu0 0
    %883 = vmatpush1.bf16.msra.mxu0 %v726
    %884 = vmatprep.subr.bf16.mxu0 0
    %885 = vmatpush1.bf16.msra.mxu0 %v731
    %886 = vmatprep.subr.bf16.mxu0 0
    %887 = vmatpush1.bf16.msra.mxu0 %v736
    %888 = vmatprep.subr.bf16.mxu0 0
    %889 = vmatpush1.bf16.msra.mxu0 %v790
    %890 = vmatprep.subr.bf16.mxu0 0
    %891 = vmatpush1.bf16.msra.mxu0 0
    %892 = vmatprep.subr.bf16.mxu0 0
    %893 = vmatpush1.bf16.msra.mxu0 0
    %894 = vmatprep.subr.bf16.mxu0 0
    %895 = vmatpush1.bf16.msra.mxu0 0
    %896 = vmatprep.subr.bf16.mxu0 0
    %897 = vmatpush1.bf16.msra.mxu0 0
    %898 = vmatprep.subr.bf16.mxu0 0
    %899 = vmatpush1.bf16.msra.mxu0 0
    %900 = vmatprep.subr.bf16.mxu0 0
    %901 = vmatpush1.bf16.msra.mxu0 0
    %902 = vmatprep.subr.bf16.mxu0 0
    %903 = vmatpush1.bf16.msra.mxu0 0
    %904 = vmatprep.subr.bf16.mxu0 0
    %905 = vmatpush1.bf16.msra.mxu0 0
    %906 = vmatprep.mubr.bf16.mxu0 0
    %907 = vmatmul.mubr.bf16.gmra.mrb[0].mxu0 %v443
    %v908 = vpop.f32.mrb[0].mxu0
    %v909 = vadd.f32 %v577, %v908
    %v910 = vpop.f32.mrb[0].mxu0
    %v911 = vpop.f32.mrb[0].mxu0
    %v912 = vpop.f32.mrb[0].mxu0
    %913 = vdwg.mxu0
    %v919 = vcombine.low %v827, %v829
    %v920 = vcombine.low %v868, %v870
    %v922 = vunpack.c.l.s4 1966171168
    %v923 = vunpack.c.0.s8 %v922
    %v924 = vlaneseq
    %v925 = vshrl.u32 %v924, 7
    %v926 = vsub.s32 %v923, %v925
    %v927 = vrot.slane %v919, %v926
    %v929 = vunpack.c.l.s4 1966171168
    %v930 = vunpack.c.0.s8 %v929
    %v931 = vlaneseq
    %v932 = vshrl.u32 %v931, 7
    %v933 = vsub.s32 %v930, %v932
    %v934 = vrot.slane %v920, %v933
    %v936 = vunpack.c.l.s4 1966171168
    %v937 = vunpack.c.0.s8 %v936
    %v938 = vlaneseq
    %v939 = vshrl.u32 %v938, 7
    %v940 = vsub.s32 %v937, %v939
    %v941 = vrot.slane %v909, %v940
    %v942 = vcombine.low %v927, %v934
    %v944 = vunpack.c.l.s4 1966171168
    %v945 = vunpack.c.0.s8 %v944
    %v946 = vlaneseq
    %v947 = vshrl.u32 %v946, 7
    %v948 = vsub.s32 %v945, %v947
    %v949 = vrot.slane %v942, %v948
    %v951 = vunpack.c.l.s4 1966171168
    %v952 = vunpack.c.0.s8 %v951
    %v953 = vlaneseq
    %v954 = vshrl.u32 %v953, 7
    %v955 = vsub.s32 %v952, %v954
    %v956 = vrot.slane %v941, %v955
    %v957 = vcombine.low %v949, %v956
    %v959 = vlaneseq
    %vm960 = vcmp.ge.s32.totalorder %v959, 0
    %vm961 = vcmp.lt.s32.totalorder %v959, 640
    %vm962 = vmand %vm960, %vm961
    %963 = vst.msk [vmem:[%s4] sm:$0x1f] %vm962, %v957
    // Predicated region
    $region30: #{forward.1} parent=1 // pred_check
      _
    $region31: #{forward.1} parent=1 // pred_check_branch
      %965 = sbr.rel (0) target = $region33
    $region32: #{forward.1} parent=1 // pred_region
      _
    $region33: #{forward.1} parent=1 // pred_fallthru
      _
    // Predicated region
    $region34: #{forward.1} parent=1 // pred_check
      _
    $region35: #{forward.1} parent=1 // pred_check_branch
      %967 = sbr.rel (0) target = $region37
    $region36: #{forward.1} parent=1 // pred_region
      _
    $region37: #{forward.1} parent=1 // pred_fallthru
      _
    %968 = vsyncpa [#allocation3], 1
    %969 = vsyncpa [#allocation5], 1

</llo_original>
